<compile_context>
chip_gen: v5e
topology: v5e:2x2
jax: 0.10.0
libtpu: 0.0.40
codegen_flags: <defaults>
</compile_context>

<pallas_src>
import jax
import jax.numpy as jnp
from jax.experimental import pallas as pl
from jax.experimental.pallas import tpu as pltpu

INPUT_SIZE = 6
HIDDEN_SIZE = 256
OUTPUT_SIZE = 3

INPUT_PAD = 8      # 6 real features + 1 "ones" column (carries fc1 bias) + 1 zero pad
OUTPUT_PAD = 128   # 3 -> 128 lane-dense output block (avoid masked vst.msk stores)


def _round_up(n, m):
    return ((n + m - 1) // m) * m


def _device_modes():
    """Pick elementwise/output dtype and core-parallel mode per TPU generation."""
    kind = ""
    try:
        kind = jax.devices()[0].device_kind.lower()
    except Exception:
        pass
    bf16_vpu = ("v6" in kind) or ("v7" in kind)     # v6e/v7x have bf16 VALU
    compute_dtype = jnp.bfloat16 if bf16_vpu else jnp.float32
    out_dtype = jnp.bfloat16 if bf16_vpu else jnp.float32
    use_core_parallel = "v7" in kind                 # 2 TensorCores/chip on v7x only
    return compute_dtype, out_dtype, use_core_parallel


def _mlp_kernel(x_ref, w1_ref, w2_ref, b2_ref, w3_ref, b3_ref, w4_ref, b4_ref, o_ref):
    # Elementwise compute dtype (bf16 on v6e/v7x, f32 on v5e) is carried by b2's dtype.
    cd = b2_ref.dtype
    x = x_ref[...]  # already bf16; column 6 is the affine "ones" column carrying b1.

    # fc1 (+ folded bias) + ReLU
    h = jnp.dot(x, w1_ref[...], preferred_element_type=jnp.float32)
    h = jnp.maximum(h.astype(cd), 0.0)
    # fc2 + ReLU
    h = jnp.dot(h.astype(jnp.bfloat16), w2_ref[...], preferred_element_type=jnp.float32)
    h = jnp.maximum(h.astype(cd) + b2_ref[...], 0.0)
    # fc3 + ReLU
    h = jnp.dot(h.astype(jnp.bfloat16), w3_ref[...], preferred_element_type=jnp.float32)
    h = jnp.maximum(h.astype(cd) + b3_ref[...], 0.0)
    # fc4 (no activation); bias kept f32; lane-dense 128-wide output (cols 3:128 zero).
    out = jnp.dot(h.astype(jnp.bfloat16), w4_ref[...], preferred_element_type=jnp.float32)
    out = out + b4_ref[...]

    o_ref[...] = out.astype(o_ref.dtype)


def manipulator_net_forward(x, params, *, tile_b=None,
                            compute_dtype=None, out_dtype=None):
    """x: (B, 6) float32.  params: f32 dict w1..w4 (in,out), b1..b4 (1,out)."""
    auto_cd, auto_od, use_core_parallel = _device_modes()
    compute_dtype = auto_cd if compute_dtype is None else compute_dtype
    out_dtype = auto_od if out_dtype is None else out_dtype

    B = x.shape[0]
    if tile_b is None:
        # 2048 rows amortizes per-step overhead (~0.35 us) far below per-tile MXU/VALU
        # work; ~10 MB of VMEM at this size, inside every generation's budget.
        tile_b = min(2048, _round_up(max(B, 1), 16))
    assert tile_b % 16 == 0, "tile_b must be a multiple of 16 (bf16 sublane packing)"
    B_pad = _round_up(B, tile_b)
    grid = (B_pad // tile_b,)

    # --- pad / cast operands (free layout plumbing in the wrapper) -------------
    # Input: bf16, append a "ones" column (affine bias trick for fc1) + zero pad -> 8.
    xb = x.astype(jnp.bfloat16)
    ones_col = jnp.ones((B, 1), jnp.bfloat16)
    zero_cols = jnp.zeros((B, INPUT_PAD - INPUT_SIZE - 1), jnp.bfloat16)
    x_aug = jnp.concatenate([xb, ones_col, zero_cols], axis=1)
    x_pad = jnp.pad(x_aug, ((0, B_pad - B), (0, 0)))

    # w1 rows: [w1; b1; 0] so the fc1 MXU pass applies the bias for free.
    w1 = jnp.concatenate(
        [params["w1"], params["b1"],
         jnp.zeros((INPUT_PAD - INPUT_SIZE - 1, HIDDEN_SIZE), jnp.float32)],
        axis=0).astype(jnp.bfloat16)
    w2 = params["w2"].astype(jnp.bfloat16)
    w3 = params["w3"].astype(jnp.bfloat16)
    w4 = jnp.pad(params["w4"], ((0, 0), (0, OUTPUT_PAD - OUTPUT_SIZE))).astype(jnp.bfloat16)

    b2 = params["b2"].astype(compute_dtype)
    b3 = params["b3"].astype(compute_dtype)
    b4 = jnp.pad(params["b4"], ((0, 0), (0, OUTPUT_PAD - OUTPUT_SIZE))).astype(jnp.float32)

    def full_spec(shape):
        # Whole-array block, same block index every grid step -> DMA'd once,
        # VMEM-resident across the batch loop.
        return pl.BlockSpec(shape, lambda i, _n=len(shape): (0,) * _n)

    in_specs = [
        pl.BlockSpec((tile_b, INPUT_PAD), lambda i: (i, 0)),      # x tile
        full_spec(w1.shape),
        full_spec(w2.shape), full_spec(b2.shape),
        full_spec(w3.shape), full_spec(b3.shape),
        full_spec(w4.shape), full_spec(b4.shape),
    ]
    out_spec = pl.BlockSpec((tile_b, OUTPUT_PAD), lambda i: (i, 0))

    if use_core_parallel and grid[0] > 1 and grid[0] % 2 == 0:
        dims = (pltpu.CORE_PARALLEL,)          # shard batch tiles over both v7x TCs
    else:
        dims = ("parallel",)

    out_pad = pl.pallas_call(
        _mlp_kernel,
        out_shape=jax.ShapeDtypeStruct((B_pad, OUTPUT_PAD), out_dtype),
        grid_spec=pltpu.PrefetchScalarGridSpec(
            num_scalar_prefetch=0,
            grid=grid,
            in_specs=in_specs,
            out_specs=out_spec,
        ),
        compiler_params=pltpu.CompilerParams(
            dimension_semantics=dims,
            vmem_limit_bytes=32 * 1024 * 1024,
        ),
    )(x_pad, w1, w2, b2, w3, b3, w4, b4)

    return out_pad[:B, :OUTPUT_SIZE].astype(jnp.float32)


def init_params(key):
    """Deterministic init mimicking nn.Linear's U(-1/sqrt(fan_in), 1/sqrt(fan_in))."""
    sizes = [
        (INPUT_SIZE, HIDDEN_SIZE),
        (HIDDEN_SIZE, HIDDEN_SIZE),
        (HIDDEN_SIZE, HIDDEN_SIZE),
        (HIDDEN_SIZE, OUTPUT_SIZE),
    ]
    params = {}
    for idx, (fan_in, fan_out) in enumerate(sizes, start=1):
        key, kw, kb = jax.random.split(key, 3)
        bound = 1.0 / jnp.sqrt(jnp.float32(fan_in))
        params[f"w{idx}"] = jax.random.uniform(
            kw, (fan_in, fan_out), jnp.float32, -bound, bound)
        params[f"b{idx}"] = jax.random.uniform(
            kb, (1, fan_out), jnp.float32, -bound, bound)
    return params


def reference_forward_matching(x, params, compute_dtype, out_dtype):
    """Mirrors the kernel numerics exactly (bf16 dot operands + f32 MXU accumulation,
    folded bf16 fc1 bias, elementwise chain in `compute_dtype`, output in `out_dtype`)."""
    bf = jnp.bfloat16

    def dot(a, w):
        return jnp.dot(a.astype(bf), w.astype(bf), preferred_element_type=jnp.float32)

    h = dot(x, params["w1"]) + params["b1"].astype(bf).astype(jnp.float32)
    h = jnp.maximum(h.astype(compute_dtype), 0.0)
    h = dot(h, params["w2"])
    h = jnp.maximum(h.astype(compute_dtype) + params["b2"].astype(compute_dtype), 0.0)
    h = dot(h, params["w3"])
    h = jnp.maximum(h.astype(compute_dtype) + params["b3"].astype(compute_dtype), 0.0)
    out = dot(h, params["w4"]) + params["b4"]
    return out.astype(out_dtype).astype(jnp.float32)


def reference_forward_f32(x, params):
    """Original PyTorch semantics (full f32)."""
    h = jnp.maximum(x @ params["w1"] + params["b1"], 0.0)
    h = jnp.maximum(h @ params["w2"] + params["b2"], 0.0)
    h = jnp.maximum(h @ params["w3"] + params["b3"], 0.0)
    return h @ params["w4"] + params["b4"]


if __name__ == "__main__":
    key = jax.random.PRNGKey(0)
    key, kx = jax.random.split(key)
    params = init_params(key)
    cd, od, _ = _device_modes()

    # Small inference-style batch.
    B = 8
    x = jax.random.normal(kx, (B, INPUT_SIZE), jnp.float32)
    out = jax.block_until_ready(manipulator_net_forward(x, params))
    assert out.shape == (B, OUTPUT_SIZE)

    # Primary check: identical numerics to the kernel's mixed-precision recipe.
    ref_match = reference_forward_matching(x, params, cd, od)
    assert jnp.allclose(out, ref_match, atol=2e-3, rtol=2e-3), "mismatch vs matching reference"
    # Secondary check: close to the original full-f32 PyTorch semantics.
    ref_f32 = reference_forward_f32(x, params)
    assert jnp.allclose(out, ref_f32, atol=5e-2, rtol=5e-2), "mismatch vs f32 reference"

    # Multi-tile grid path (exercises batch padding + pipelining with a small tile).
    key, kx2 = jax.random.split(key)
    B2 = 272
    x2 = jax.random.normal(kx2, (B2, INPUT_SIZE), jnp.float32)
    out2 = jax.block_until_ready(manipulator_net_forward(x2, params, tile_b=128))
    assert out2.shape == (B2, OUTPUT_SIZE)
    ref2 = reference_forward_matching(x2, params, cd, od)
    assert jnp.allclose(out2, ref2, atol=2e-3, rtol=2e-3), "mismatch on multi-tile path"

    print("KERNEL_OK")
</pallas_src>

<mosaic_0001>
module attributes {stable_mosaic.version = 11 : i64} {
  func.func @_mlp_kernel(%arg0: i32, %arg1: memref<16x8xbf16, #tpu.memory_space<vmem>>, %arg2: memref<8x256xbf16, #tpu.memory_space<vmem>>, %arg3: memref<256x256xbf16, #tpu.memory_space<vmem>>, %arg4: memref<1x256xf32, #tpu.memory_space<vmem>>, %arg5: memref<256x256xbf16, #tpu.memory_space<vmem>>, %arg6: memref<1x256xf32, #tpu.memory_space<vmem>>, %arg7: memref<256x128xbf16, #tpu.memory_space<vmem>>, %arg8: memref<1x128xf32, #tpu.memory_space<vmem>>, %arg9: memref<16x128xf32, #tpu.memory_space<vmem>>) attributes {dimension_semantics = [#tpu.dimension_semantics<parallel>], iteration_bounds = array<i64: 1>, scalar_prefetch = 0 : i64, scratch_operands = 0 : i64, tpu.core_type = #tpu.core_type<tc>, window_params = [{transform_indices = @transform_0, window_bounds = array<i64: 16, 8>}, {pipeline_mode = #tpu.pipeline_mode<synchronous>, transform_indices = @transform_1, window_bounds = array<i64: 8, 256>}, {pipeline_mode = #tpu.pipeline_mode<synchronous>, transform_indices = @transform_2, window_bounds = array<i64: 256, 256>}, {pipeline_mode = #tpu.pipeline_mode<synchronous>, transform_indices = @transform_3, window_bounds = array<i64: 1, 256>}, {pipeline_mode = #tpu.pipeline_mode<synchronous>, transform_indices = @transform_4, window_bounds = array<i64: 256, 256>}, {pipeline_mode = #tpu.pipeline_mode<synchronous>, transform_indices = @transform_5, window_bounds = array<i64: 1, 256>}, {pipeline_mode = #tpu.pipeline_mode<synchronous>, transform_indices = @transform_6, window_bounds = array<i64: 256, 128>}, {pipeline_mode = #tpu.pipeline_mode<synchronous>, transform_indices = @transform_7, window_bounds = array<i64: 1, 128>}, {transform_indices = @transform_8, window_bounds = array<i64: 16, 128>}]} {
    %c0 = arith.constant 0 : index
    %c0_0 = arith.constant 0 : index
    %0 = vector.load %arg1[%c0, %c0_0] : memref<16x8xbf16, #tpu.memory_space<vmem>>, vector<16x8xbf16>
    %c0_1 = arith.constant 0 : index
    %c0_2 = arith.constant 0 : index
    %1 = vector.load %arg2[%c0_1, %c0_2] : memref<8x256xbf16, #tpu.memory_space<vmem>>, vector<8x256xbf16>
    %cst = arith.constant dense<0.000000e+00> : vector<16x256xf32>
    %2 = tpu.matmul %0, %1, %cst {dimension_numbers = #tpu.dot_dimension_numbers<[1], [0], [0], [1], [0, 0, 1, 1], [], []>} : vector<16x8xbf16>, vector<8x256xbf16>, vector<16x256xf32> -> vector<16x256xf32>
    %cst_3 = arith.constant 0.000000e+00 : f32
    %3 = vector.broadcast %cst_3 : f32 to vector<16x256xf32>
    %4 = arith.maximumf %2, %3 : vector<16x256xf32>
    %5 = arith.truncf %4 : vector<16x256xf32> to vector<16x256xbf16>
    %c0_4 = arith.constant 0 : index
    %c0_5 = arith.constant 0 : index
    %6 = vector.load %arg3[%c0_4, %c0_5] : memref<256x256xbf16, #tpu.memory_space<vmem>>, vector<256x256xbf16>
    %cst_6 = arith.constant dense<0.000000e+00> : vector<16x256xf32>
    %7 = tpu.matmul %5, %6, %cst_6 {dimension_numbers = #tpu.dot_dimension_numbers<[1], [0], [0], [1], [0, 0, 1, 1], [], []>} : vector<16x256xbf16>, vector<256x256xbf16>, vector<16x256xf32> -> vector<16x256xf32>
    %c0_7 = arith.constant 0 : index
    %c0_8 = arith.constant 0 : index
    %8 = vector.load %arg4[%c0_7, %c0_8] : memref<1x256xf32, #tpu.memory_space<vmem>>, vector<1x256xf32>
    %9 = vector.broadcast %8 : vector<1x256xf32> to vector<16x256xf32>
    %10 = arith.addf %7, %9 : vector<16x256xf32>
    %cst_9 = arith.constant 0.000000e+00 : f32
    %11 = vector.broadcast %cst_9 : f32 to vector<16x256xf32>
    %12 = arith.maximumf %10, %11 : vector<16x256xf32>
    %13 = arith.truncf %12 : vector<16x256xf32> to vector<16x256xbf16>
    %c0_10 = arith.constant 0 : index
    %c0_11 = arith.constant 0 : index
    %14 = vector.load %arg5[%c0_10, %c0_11] : memref<256x256xbf16, #tpu.memory_space<vmem>>, vector<256x256xbf16>
    %cst_12 = arith.constant dense<0.000000e+00> : vector<16x256xf32>
    %15 = tpu.matmul %13, %14, %cst_12 {dimension_numbers = #tpu.dot_dimension_numbers<[1], [0], [0], [1], [0, 0, 1, 1], [], []>} : vector<16x256xbf16>, vector<256x256xbf16>, vector<16x256xf32> -> vector<16x256xf32>
    %c0_13 = arith.constant 0 : index
    %c0_14 = arith.constant 0 : index
    %16 = vector.load %arg6[%c0_13, %c0_14] : memref<1x256xf32, #tpu.memory_space<vmem>>, vector<1x256xf32>
    %17 = vector.broadcast %16 : vector<1x256xf32> to vector<16x256xf32>
    %18 = arith.addf %15, %17 : vector<16x256xf32>
    %cst_15 = arith.constant 0.000000e+00 : f32
    %19 = vector.broadcast %cst_15 : f32 to vector<16x256xf32>
    %20 = arith.maximumf %18, %19 : vector<16x256xf32>
    %21 = arith.truncf %20 : vector<16x256xf32> to vector<16x256xbf16>
    %c0_16 = arith.constant 0 : index
    %c0_17 = arith.constant 0 : index
    %22 = vector.load %arg7[%c0_16, %c0_17] : memref<256x128xbf16, #tpu.memory_space<vmem>>, vector<256x128xbf16>
    %cst_18 = arith.constant dense<0.000000e+00> : vector<16x128xf32>
    %23 = tpu.matmul %21, %22, %cst_18 {dimension_numbers = #tpu.dot_dimension_numbers<[1], [0], [0], [1], [0, 0, 1, 1], [], []>} : vector<16x256xbf16>, vector<256x128xbf16>, vector<16x128xf32> -> vector<16x128xf32>
    %c0_19 = arith.constant 0 : index
    %c0_20 = arith.constant 0 : index
    %24 = vector.load %arg8[%c0_19, %c0_20] : memref<1x128xf32, #tpu.memory_space<vmem>>, vector<1x128xf32>
    %25 = vector.broadcast %24 : vector<1x128xf32> to vector<16x128xf32>
    %26 = arith.addf %23, %25 : vector<16x128xf32>
    %c0_21 = arith.constant 0 : index
    %c0_22 = arith.constant 0 : index
    %27 = vector.load %arg9[%c0_21, %c0_22] : memref<16x128xf32, #tpu.memory_space<vmem>>, vector<16x128xf32>
    tpu.vector_store %arg9[%c0_21, %c0_22], %26 {strides = array<i32>} : memref<16x128xf32, #tpu.memory_space<vmem>>, vector<16x128xf32>,
    return
  }
  func.func @transform_0(%arg0: i32) -> (i32, i32) {
    %c0_i32 = arith.constant 0 : i32
    %c0_i32_0 = arith.constant 0 : i32
    return %arg0, %c0_i32 : i32, i32
  }
  func.func @transform_1(%arg0: i32) -> (i32, i32) {
    %c0_i32 = arith.constant 0 : i32
    %c0_i32_0 = arith.constant 0 : i32
    %c0_i32_1 = arith.constant 0 : i32
    return %c0_i32, %c0_i32_0 : i32, i32
  }
  func.func @transform_2(%arg0: i32) -> (i32, i32) {
    %c0_i32 = arith.constant 0 : i32
    %c0_i32_0 = arith.constant 0 : i32
    %c0_i32_1 = arith.constant 0 : i32
    return %c0_i32, %c0_i32_0 : i32, i32
  }
  func.func @transform_3(%arg0: i32) -> (i32, i32) {
    %c0_i32 = arith.constant 0 : i32
    %c0_i32_0 = arith.constant 0 : i32
    %c0_i32_1 = arith.constant 0 : i32
    return %c0_i32, %c0_i32_0 : i32, i32
  }
  func.func @transform_4(%arg0: i32) -> (i32, i32) {
    %c0_i32 = arith.constant 0 : i32
    %c0_i32_0 = arith.constant 0 : i32
    %c0_i32_1 = arith.constant 0 : i32
    return %c0_i32, %c0_i32_0 : i32, i32
  }
  func.func @transform_5(%arg0: i32) -> (i32, i32) {
    %c0_i32 = arith.constant 0 : i32
    %c0_i32_0 = arith.constant 0 : i32
    %c0_i32_1 = arith.constant 0 : i32
    return %c0_i32, %c0_i32_0 : i32, i32
  }
  func.func @transform_6(%arg0: i32) -> (i32, i32) {
    %c0_i32 = arith.constant 0 : i32
    %c0_i32_0 = arith.constant 0 : i32
    %c0_i32_1 = arith.constant 0 : i32
    return %c0_i32, %c0_i32_0 : i32, i32
  }
  func.func @transform_7(%arg0: i32) -> (i32, i32) {
    %c0_i32 = arith.constant 0 : i32
    %c0_i32_0 = arith.constant 0 : i32
    %c0_i32_1 = arith.constant 0 : i32
    return %c0_i32, %c0_i32_0 : i32, i32
  }
  func.func @transform_8(%arg0: i32) -> (i32, i32) {
    %c0_i32 = arith.constant 0 : i32
    %c0_i32_0 = arith.constant 0 : i32
    return %arg0, %c0_i32 : i32, i32
  }
}

</mosaic_0001>

<llo_original>
// kernel: tpu_custom_call.1
$region0: #{tpu_custom_call.1}
  #allocation0 [shape = 'u32[]', space=smem, size = 0x4, offset = 0x4, fixed_abs, tag = 'smem constant byte address 0x4 - core index']
  #allocation1 [shape = 'u32[72,128]{1,0:T(1,128)}', space=vmem, size = 0x9000, scoped, tag = 'internal scratch']
  %s0 = inlined_call_operand.vmem [shape: bf16[16,8], index: 0, kind: input, shape index: {}]
  %s1 = inlined_call_operand.vmem [shape: bf16[8,256], index: 1, kind: input, shape index: {}]
  %s2 = inlined_call_operand.hbm [shape: bf16[256,256], index: 2, kind: input, shape index: {}]
  %s3 = inlined_call_operand.vmem [shape: f32[1,256], index: 3, kind: input, shape index: {}]
  %s4 = inlined_call_operand.hbm [shape: bf16[256,256], index: 4, kind: input, shape index: {}]
  %s5 = inlined_call_operand.vmem [shape: f32[1,256], index: 5, kind: input, shape index: {}]
  %s6 = inlined_call_operand.hbm [shape: bf16[256,128], index: 6, kind: input, shape index: {}]
  %s7 = inlined_call_operand.vmem [shape: f32[1,128], index: 7, kind: input, shape index: {}]
  %s8 = inlined_call_operand.hbm [shape: f32[16,128], index: 8, kind: output, shape index: {}]
  %s9 = sld [smem:[#allocation0]]
  $region54: #{tpu_custom_call.1} parent=0
    _
  %s11 = ssub.s32 1, %s9
  %s12 = scalar_select 0, %s11, %s9
  $region1: #{tpu_custom_call.1} parent=0
    #allocation2 [shape = 'u8[131072]{0}', space=vmem, size = 0x20000, scoped, tag = 'input window, operand 2, single buffered']
    #allocation3 [shape = 's32[1]{0}', space=sflag, size = 0x4, scoped, tag = 'scoped memory for tpu_custom_call.1']
    #allocation4 [shape = 's32[1]{0}', space=sflag, size = 0x4, scoped, tag = 'scoped memory for tpu_custom_call.1']
    #allocation5 [shape = 'u8[131072]{0}', space=vmem, size = 0x20000, scoped, tag = 'input window, operand 4, single buffered']
    #allocation6 [shape = 's32[1]{0}', space=sflag, size = 0x4, scoped, tag = 'scoped memory for tpu_custom_call.1']
    #allocation7 [shape = 'u8[65536]{0}', space=vmem, size = 0x10000, scoped, tag = 'input window, operand 6, single buffered']
    #allocation8 [shape = 'u8[8192]{0}', space=vmem, size = 0x2000, scoped, tag = 'output window, operand 0, single buffered']
    %13 = vsyncpa [#allocation3], 0
    %14 = vsyncpa [#allocation6], 0
    %15 = vsyncpa [#allocation4], 0
    // Predicated region
    $region2: #{tpu_custom_call.1} parent=1 // pred_check
      _
    $region3: #{tpu_custom_call.1} parent=1 // pred_check_branch
      %17 = sbr.rel (0) target = $region5
    $region4: #{tpu_custom_call.1} parent=1 // pred_region
      _
    $region5: #{tpu_custom_call.1} parent=1 // pred_fallthru
      _
    // Predicated region
    $region6: #{tpu_custom_call.1} parent=1 // pred_check
      _
    $region7: #{tpu_custom_call.1} parent=1 // pred_check_branch
      %19 = sbr.rel (0) target = $region9
    $region8: #{tpu_custom_call.1} parent=1 // pred_region
      _
    $region9: #{tpu_custom_call.1} parent=1 // pred_fallthru
      _
    // Predicated region
    $region10: #{tpu_custom_call.1} parent=1 // pred_check
      _
    $region11: #{tpu_custom_call.1} parent=1 // pred_check_branch
      %21 = sbr.rel (0) target = $region13
    $region12: #{tpu_custom_call.1} parent=1 // pred_region
      %23 = vsyncadd [#allocation3], 0
      %s24 = sshll.u32 %s2, 4
      %s25 = int_to_ptr.hbm [resolvable:$true] %s24
      %s26 = sshll.u32 [#allocation2], 4
      %s27 = int_to_ptr.vmem [resolvable:$true] %s26
      %32 = dma.hbm_to_vmem [thread:$0]  %s25, 4096, %s27, [#allocation3], 128, 128, 8
    $region13: #{tpu_custom_call.1} parent=1 // pred_fallthru
      _
    // Predicated region
    $region14: #{tpu_custom_call.1} parent=1 // pred_check
      _
    $region15: #{tpu_custom_call.1} parent=1 // pred_check_branch
      %34 = sbr.rel (0) target = $region17
    $region16: #{tpu_custom_call.1} parent=1 // pred_region
      _
    $region17: #{tpu_custom_call.1} parent=1 // pred_fallthru
      _
    // Predicated region
    $region18: #{tpu_custom_call.1} parent=1 // pred_check
      _
    $region19: #{tpu_custom_call.1} parent=1 // pred_check_branch
      %36 = sbr.rel (0) target = $region21
    $region20: #{tpu_custom_call.1} parent=1 // pred_region
      %38 = vsyncadd [#allocation6], 0
      %s39 = sshll.u32 %s4, 4
      %s40 = int_to_ptr.hbm [resolvable:$true] %s39
      %s41 = sshll.u32 [#allocation5], 4
      %s42 = int_to_ptr.vmem [resolvable:$true] %s41
      %47 = dma.hbm_to_vmem [thread:$0]  %s40, 4096, %s42, [#allocation6], 128, 128, 8
    $region21: #{tpu_custom_call.1} parent=1 // pred_fallthru
      _
    // Predicated region
    $region22: #{tpu_custom_call.1} parent=1 // pred_check
      _
    $region23: #{tpu_custom_call.1} parent=1 // pred_check_branch
      %49 = sbr.rel (0) target = $region25
    $region24: #{tpu_custom_call.1} parent=1 // pred_region
      _
    $region25: #{tpu_custom_call.1} parent=1 // pred_fallthru
      _
    // Predicated region
    $region26: #{tpu_custom_call.1} parent=1 // pred_check
      _
    $region27: #{tpu_custom_call.1} parent=1 // pred_check_branch
      %51 = sbr.rel (0) target = $region29
    $region28: #{tpu_custom_call.1} parent=1 // pred_region
      %53 = vsyncadd [#allocation6], 0
      %s54 = sshll.u32 %s6, 4
      %s55 = int_to_ptr.hbm [resolvable:$true] %s54
      %s56 = sshll.u32 [#allocation7], 4
      %s57 = int_to_ptr.vmem [resolvable:$true] %s56
      %62 = dma.hbm_to_vmem [thread:$0]  %s55, 2048, %s57, [#allocation6], 64, 64, 4
    $region29: #{tpu_custom_call.1} parent=1 // pred_fallthru
      _
    // Predicated region
    $region30: #{tpu_custom_call.1} parent=1 // pred_check
      _
    $region31: #{tpu_custom_call.1} parent=1 // pred_check_branch
      %64 = sbr.rel (0) target = $region33
    $region32: #{tpu_custom_call.1} parent=1 // pred_region
      _
    $region33: #{tpu_custom_call.1} parent=1 // pred_fallthru
      _
    // Predicated region
    $region34: #{tpu_custom_call.1} parent=1 // pred_check
      _
    $region35: #{tpu_custom_call.1} parent=1 // pred_check_branch
      %66 = sbr.rel (0) target = $region37
    $region36: #{tpu_custom_call.1} parent=1 // pred_region
      %68 = dma.done [#allocation3], 4096
    $region37: #{tpu_custom_call.1} parent=1 // pred_fallthru
      _
    // Predicated region
    $region38: #{tpu_custom_call.1} parent=1 // pred_check
      _
    $region39: #{tpu_custom_call.1} parent=1 // pred_check_branch
      %70 = sbr.rel (0) target = $region41
    $region40: #{tpu_custom_call.1} parent=1 // pred_region
      %72 = dma.done [#allocation6], 4096
    $region41: #{tpu_custom_call.1} parent=1 // pred_fallthru
      _
    // Predicated region
    $region42: #{tpu_custom_call.1} parent=1 // pred_check
      _
    $region43: #{tpu_custom_call.1} parent=1 // pred_check_branch
      %74 = sbr.rel (0) target = $region45
    $region44: #{tpu_custom_call.1} parent=1 // pred_region
      %76 = dma.done [#allocation6], 2048
    $region45: #{tpu_custom_call.1} parent=1 // pred_fallthru
      _
    %v78 = vld [vmem:[%s0] sm:$0xf]
    %v79 = vld [vmem:[%s0 + $0x4] sm:$0xf]
    %v80 = vld [vmem:[%s1] sm:$0xff]
    %v83 = vunpack.c.l.b16 %v78
    %v84 = vunpack.c.l.b16 %v79
    %v85 = vpack.c.b16 %v84, %v83
    %v87 = vunpack.c.l.b16 %v80
    %v88 = vunpack.c.h.b16 %v80
    %v89 = vpack.c.b16 %v87, %v87
    %v90 = vpack.c.b16 %v88, %v88
    %vm91 = vcmask 64512
    %v93 = vsel %vm91, %v85, 0
    %vm95 = vcmask 1043456
    %v97 = vsel %vm95, %v89, 0
    %v100 = vsel %vm95, %v90, 0
    %102 = vmatpush.bf16.msra.mxu0 0
    %103 = vmatpush.bf16.msra.mxu0 0
    %104 = vmatpush.bf16.msra.mxu0 0
    %105 = vmatpush.bf16.msra.mxu0 0
    %106 = vmatpush.bf16.msra.mxu0 0
    %107 = vmatpush.bf16.msra.mxu0 0
    %108 = vmatpush.bf16.msra.mxu0 0
    %109 = vmatpush.bf16.msra.mxu0 %v97
    %110 = vmatmul.bf16.gmra.mxu0 %v93
    %v111 = vpop.f32.mrf.mxu0
    %v112 = vadd.f32 0.0, %v111
    %v113 = vpop.f32.mrf.mxu0
    %v114 = vadd.f32 0.0, %v113
    %115 = vdwg.mxu0
    %116 = vmatpush.bf16.msra.mxu0 0
    %117 = vmatpush.bf16.msra.mxu0 0
    %118 = vmatpush.bf16.msra.mxu0 0
    %119 = vmatpush.bf16.msra.mxu0 0
    %120 = vmatpush.bf16.msra.mxu0 0
    %121 = vmatpush.bf16.msra.mxu0 0
    %122 = vmatpush.bf16.msra.mxu0 0
    %123 = vmatpush.bf16.msra.mxu0 %v100
    %124 = vmatmul.bf16.gmra.mxu0 %v93
    %v125 = vpop.f32.mrf.mxu0
    %v126 = vadd.f32 0.0, %v125
    %v127 = vpop.f32.mrf.mxu0
    %v128 = vadd.f32 0.0, %v127
    %129 = vdwg.mxu0
    %v130 = vmax.f32 %v112, 0.0
    %v131 = vmax.f32 %v126, 0.0
    %v132 = vmax.f32 %v114, 0.0
    %v133 = vmax.f32 %v128, 0.0
    %v134 = vpack.c.bf16 %v132, %v130
    %v135 = vpack.c.bf16 %v133, %v131
    %v136 = vld [vmem:[#allocation2] sm:$0xff]
    %v137 = vld [vmem:[#allocation2 + $0x8] sm:$0xff]
    %v138 = vld [vmem:[#allocation2 + $0x10] sm:$0xff]
    %v139 = vld [vmem:[#allocation2 + $0x18] sm:$0xff]
    %v140 = vld [vmem:[#allocation2 + $0x20] sm:$0xff]
    %v141 = vld [vmem:[#allocation2 + $0x28] sm:$0xff]
    %v142 = vld [vmem:[#allocation2 + $0x30] sm:$0xff]
    %v143 = vld [vmem:[#allocation2 + $0x38] sm:$0xff]
    %v144 = vld [vmem:[#allocation2 + $0x40] sm:$0xff]
    %v145 = vld [vmem:[#allocation2 + $0x48] sm:$0xff]
    %v146 = vld [vmem:[#allocation2 + $0x50] sm:$0xff]
    %v147 = vld [vmem:[#allocation2 + $0x58] sm:$0xff]
    %v148 = vld [vmem:[#allocation2 + $0x60] sm:$0xff]
    %v149 = vld [vmem:[#allocation2 + $0x68] sm:$0xff]
    %v150 = vld [vmem:[#allocation2 + $0x70] sm:$0xff]
    %v151 = vld [vmem:[#allocation2 + $0x78] sm:$0xff]
    %v152 = vld [vmem:[#allocation2 + $0x80] sm:$0xff]
    %v153 = vld [vmem:[#allocation2 + $0x88] sm:$0xff]
    %v154 = vld [vmem:[#allocation2 + $0x90] sm:$0xff]
    %v155 = vld [vmem:[#allocation2 + $0x98] sm:$0xff]
    %v156 = vld [vmem:[#allocation2 + $0xa0] sm:$0xff]
    %v157 = vld [vmem:[#allocation2 + $0xa8] sm:$0xff]
    %v158 = vld [vmem:[#allocation2 + $0xb0] sm:$0xff]
    %v159 = vld [vmem:[#allocation2 + $0xb8] sm:$0xff]
    %v160 = vld [vmem:[#allocation2 + $0xc0] sm:$0xff]
    %v161 = vld [vmem:[#allocation2 + $0xc8] sm:$0xff]
    %v162 = vld [vmem:[#allocation2 + $0xd0] sm:$0xff]
    %v163 = vld [vmem:[#allocation2 + $0xd8] sm:$0xff]
    %v164 = vld [vmem:[#allocation2 + $0xe0] sm:$0xff]
    %v165 = vld [vmem:[#allocation2 + $0xe8] sm:$0xff]
    %v166 = vld [vmem:[#allocation2 + $0xf0] sm:$0xff]
    %v167 = vld [vmem:[#allocation2 + $0xf8] sm:$0xff]
    %v168 = vld [vmem:[%s3] sm:$0x3]
    %v170 = vperm.slane %v168, 0
    %v171 = vperm.slane %v168, 1
    %v206 = vunpack.c.l.b16 %v136
    %v207 = vunpack.c.h.b16 %v136
    %v208 = vunpack.c.l.b16 %v137
    %v209 = vunpack.c.h.b16 %v137
    %v210 = vunpack.c.l.b16 %v138
    %v211 = vunpack.c.h.b16 %v138
    %v212 = vunpack.c.l.b16 %v139
    %v213 = vunpack.c.h.b16 %v139
    %v214 = vunpack.c.l.b16 %v140
    %v215 = vunpack.c.h.b16 %v140
    %v216 = vunpack.c.l.b16 %v141
    %v217 = vunpack.c.h.b16 %v141
    %v218 = vunpack.c.l.b16 %v142
    %v219 = vunpack.c.h.b16 %v142
    %v220 = vunpack.c.l.b16 %v143
    %v221 = vunpack.c.h.b16 %v143
    %v222 = vunpack.c.l.b16 %v144
    %v223 = vunpack.c.h.b16 %v144
    %v224 = vunpack.c.l.b16 %v145
    %v225 = vunpack.c.h.b16 %v145
    %v226 = vunpack.c.l.b16 %v146
    %v227 = vunpack.c.h.b16 %v146
    %v228 = vunpack.c.l.b16 %v147
    %v229 = vunpack.c.h.b16 %v147
    %v230 = vunpack.c.l.b16 %v148
    %v231 = vunpack.c.h.b16 %v148
    %v232 = vunpack.c.l.b16 %v149
    %v233 = vunpack.c.h.b16 %v149
    %v234 = vunpack.c.l.b16 %v150
    %v235 = vunpack.c.h.b16 %v150
    %v236 = vunpack.c.l.b16 %v151
    %v237 = vunpack.c.h.b16 %v151
    %v238 = vunpack.c.l.b16 %v152
    %v239 = vunpack.c.h.b16 %v152
    %v240 = vunpack.c.l.b16 %v153
    %v241 = vunpack.c.h.b16 %v153
    %v242 = vunpack.c.l.b16 %v154
    %v243 = vunpack.c.h.b16 %v154
    %v244 = vunpack.c.l.b16 %v155
    %v245 = vunpack.c.h.b16 %v155
    %v246 = vunpack.c.l.b16 %v156
    %v247 = vunpack.c.h.b16 %v156
    %v248 = vunpack.c.l.b16 %v157
    %v249 = vunpack.c.h.b16 %v157
    %v250 = vunpack.c.l.b16 %v158
    %v251 = vunpack.c.h.b16 %v158
    %v252 = vunpack.c.l.b16 %v159
    %v253 = vunpack.c.h.b16 %v159
    %v254 = vunpack.c.l.b16 %v160
    %v255 = vunpack.c.h.b16 %v160
    %v256 = vunpack.c.l.b16 %v161
    %v257 = vunpack.c.h.b16 %v161
    %v258 = vunpack.c.l.b16 %v162
    %v259 = vunpack.c.h.b16 %v162
    %v260 = vunpack.c.l.b16 %v163
    %v261 = vunpack.c.h.b16 %v163
    %v262 = vunpack.c.l.b16 %v164
    %v263 = vunpack.c.h.b16 %v164
    %v264 = vunpack.c.l.b16 %v165
    %v265 = vunpack.c.h.b16 %v165
    %v266 = vunpack.c.l.b16 %v166
    %v267 = vunpack.c.h.b16 %v166
    %v268 = vunpack.c.l.b16 %v167
    %v269 = vunpack.c.h.b16 %v167
    %v270 = vpack.c.b16 %v208, %v206
    %v271 = vpack.c.b16 %v209, %v207
    %v272 = vpack.c.b16 %v212, %v210
    %v273 = vpack.c.b16 %v213, %v211
    %v274 = vpack.c.b16 %v216, %v214
    %v275 = vpack.c.b16 %v217, %v215
    %v276 = vpack.c.b16 %v220, %v218
    %v277 = vpack.c.b16 %v221, %v219
    %v278 = vpack.c.b16 %v224, %v222
    %v279 = vpack.c.b16 %v225, %v223
    %v280 = vpack.c.b16 %v228, %v226
    %v281 = vpack.c.b16 %v229, %v227
    %v282 = vpack.c.b16 %v232, %v230
    %v283 = vpack.c.b16 %v233, %v231
    %v284 = vpack.c.b16 %v236, %v234
    %v285 = vpack.c.b16 %v237, %v235
    %v286 = vpack.c.b16 %v240, %v238
    %v287 = vpack.c.b16 %v241, %v239
    %v288 = vpack.c.b16 %v244, %v242
    %v289 = vpack.c.b16 %v245, %v243
    %v290 = vpack.c.b16 %v248, %v246
    %v291 = vpack.c.b16 %v249, %v247
    %v292 = vpack.c.b16 %v252, %v250
    %v293 = vpack.c.b16 %v253, %v251
    %v294 = vpack.c.b16 %v256, %v254
    %v295 = vpack.c.b16 %v257, %v255
    %v296 = vpack.c.b16 %v260, %v258
    %v297 = vpack.c.b16 %v261, %v259
    %v298 = vpack.c.b16 %v264, %v262
    %v299 = vpack.c.b16 %v265, %v263
    %v300 = vpack.c.b16 %v268, %v266
    %v301 = vpack.c.b16 %v269, %v267
    %334 = vmatpush.bf16.msra.mxu0 %v284
    %335 = vmatpush.bf16.msra.mxu0 %v282
    %336 = vmatpush.bf16.msra.mxu0 %v280
    %337 = vmatpush.bf16.msra.mxu0 %v278
    %338 = vmatpush.bf16.msra.mxu0 %v276
    %339 = vmatpush.bf16.msra.mxu0 %v274
    %340 = vmatpush.bf16.msra.mxu0 %v272
    %341 = vmatpush.bf16.msra.mxu0 %v270
    %342 = vmatmul.bf16.gmra.mxu0 %v134
    %v343 = vpop.f32.mrf.mxu0
    %v344 = vadd.f32 %v170, %v343
    %v345 = vpop.f32.mrf.mxu0
    %v346 = vadd.f32 %v170, %v345
    %347 = vdwg.mxu0
    %348 = vmatpush.bf16.msra.mxu0 %v300
    %349 = vmatpush.bf16.msra.mxu0 %v298
    %350 = vmatpush.bf16.msra.mxu0 %v296
    %351 = vmatpush.bf16.msra.mxu0 %v294
    %352 = vmatpush.bf16.msra.mxu0 %v292
    %353 = vmatpush.bf16.msra.mxu0 %v290
    %354 = vmatpush.bf16.msra.mxu0 %v288
    %355 = vmatpush.bf16.msra.mxu0 %v286
    %356 = vmatmul.bf16.gmra.mxu0 %v135
    %v357 = vpop.f32.mrf.mxu0
    %v358 = vadd.f32 %v344, %v357
    %v359 = vpop.f32.mrf.mxu0
    %v360 = vadd.f32 %v346, %v359
    %361 = vdwg.mxu0
    %362 = vmatpush.bf16.msra.mxu0 %v285
    %363 = vmatpush.bf16.msra.mxu0 %v283
    %364 = vmatpush.bf16.msra.mxu0 %v281
    %365 = vmatpush.bf16.msra.mxu0 %v279
    %366 = vmatpush.bf16.msra.mxu0 %v277
    %367 = vmatpush.bf16.msra.mxu0 %v275
    %368 = vmatpush.bf16.msra.mxu0 %v273
    %369 = vmatpush.bf16.msra.mxu0 %v271
    %370 = vmatmul.bf16.gmra.mxu0 %v134
    %v371 = vpop.f32.mrf.mxu0
    %v372 = vadd.f32 %v171, %v371
    %v373 = vpop.f32.mrf.mxu0
    %v374 = vadd.f32 %v171, %v373
    %375 = vdwg.mxu0
    %376 = vmatpush.bf16.msra.mxu0 %v301
    %377 = vmatpush.bf16.msra.mxu0 %v299
    %378 = vmatpush.bf16.msra.mxu0 %v297
    %379 = vmatpush.bf16.msra.mxu0 %v295
    %380 = vmatpush.bf16.msra.mxu0 %v293
    %381 = vmatpush.bf16.msra.mxu0 %v291
    %382 = vmatpush.bf16.msra.mxu0 %v289
    %383 = vmatpush.bf16.msra.mxu0 %v287
    %384 = vmatmul.bf16.gmra.mxu0 %v135
    %v385 = vpop.f32.mrf.mxu0
    %v386 = vadd.f32 %v372, %v385
    %v387 = vpop.f32.mrf.mxu0
    %v388 = vadd.f32 %v374, %v387
    %389 = vdwg.mxu0
    %v390 = vmax.f32 %v358, 0.0
    %v391 = vmax.f32 %v386, 0.0
    %v392 = vmax.f32 %v360, 0.0
    %v393 = vmax.f32 %v388, 0.0
    %v394 = vpack.c.bf16 %v392, %v390
    %v395 = vpack.c.bf16 %v393, %v391
    %v396 = vld [vmem:[#allocation5] sm:$0xff]
    %v397 = vld [vmem:[#allocation5 + $0x8] sm:$0xff]
    %v398 = vld [vmem:[#allocation5 + $0x10] sm:$0xff]
    %v399 = vld [vmem:[#allocation5 + $0x18] sm:$0xff]
    %v400 = vld [vmem:[#allocation5 + $0x20] sm:$0xff]
    %v401 = vld [vmem:[#allocation5 + $0x28] sm:$0xff]
    %v402 = vld [vmem:[#allocation5 + $0x30] sm:$0xff]
    %v403 = vld [vmem:[#allocation5 + $0x38] sm:$0xff]
    %v404 = vld [vmem:[#allocation5 + $0x40] sm:$0xff]
    %v405 = vld [vmem:[#allocation5 + $0x48] sm:$0xff]
    %v406 = vld [vmem:[#allocation5 + $0x50] sm:$0xff]
    %v407 = vld [vmem:[#allocation5 + $0x58] sm:$0xff]
    %v408 = vld [vmem:[#allocation5 + $0x60] sm:$0xff]
    %v409 = vld [vmem:[#allocation5 + $0x68] sm:$0xff]
    %v410 = vld [vmem:[#allocation5 + $0x70] sm:$0xff]
    %v411 = vld [vmem:[#allocation5 + $0x78] sm:$0xff]
    %v412 = vld [vmem:[#allocation5 + $0x80] sm:$0xff]
    %v413 = vld [vmem:[#allocation5 + $0x88] sm:$0xff]
    %v414 = vld [vmem:[#allocation5 + $0x90] sm:$0xff]
    %v415 = vld [vmem:[#allocation5 + $0x98] sm:$0xff]
    %v416 = vld [vmem:[#allocation5 + $0xa0] sm:$0xff]
    %v417 = vld [vmem:[#allocation5 + $0xa8] sm:$0xff]
    %v418 = vld [vmem:[#allocation5 + $0xb0] sm:$0xff]
    %v419 = vld [vmem:[#allocation5 + $0xb8] sm:$0xff]
    %v420 = vld [vmem:[#allocation5 + $0xc0] sm:$0xff]
    %v421 = vld [vmem:[#allocation5 + $0xc8] sm:$0xff]
    %v422 = vld [vmem:[#allocation5 + $0xd0] sm:$0xff]
    %v423 = vld [vmem:[#allocation5 + $0xd8] sm:$0xff]
    %v424 = vld [vmem:[#allocation5 + $0xe0] sm:$0xff]
    %v425 = vld [vmem:[#allocation5 + $0xe8] sm:$0xff]
    %v426 = vld [vmem:[#allocation5 + $0xf0] sm:$0xff]
    %v427 = vld [vmem:[#allocation5 + $0xf8] sm:$0xff]
    %v428 = vld [vmem:[%s5] sm:$0x3]
    %v430 = vperm.slane %v428, 0
    %v431 = vperm.slane %v428, 1
    %v466 = vunpack.c.l.b16 %v396
    %v467 = vunpack.c.h.b16 %v396
    %v468 = vunpack.c.l.b16 %v397
    %v469 = vunpack.c.h.b16 %v397
    %v470 = vunpack.c.l.b16 %v398
    %v471 = vunpack.c.h.b16 %v398
    %v472 = vunpack.c.l.b16 %v399
    %v473 = vunpack.c.h.b16 %v399
    %v474 = vunpack.c.l.b16 %v400
    %v475 = vunpack.c.h.b16 %v400
    %v476 = vunpack.c.l.b16 %v401
    %v477 = vunpack.c.h.b16 %v401
    %v478 = vunpack.c.l.b16 %v402
    %v479 = vunpack.c.h.b16 %v402
    %v480 = vunpack.c.l.b16 %v403
    %v481 = vunpack.c.h.b16 %v403
    %v482 = vunpack.c.l.b16 %v404
    %v483 = vunpack.c.h.b16 %v404
    %v484 = vunpack.c.l.b16 %v405
    %v485 = vunpack.c.h.b16 %v405
    %v486 = vunpack.c.l.b16 %v406
    %v487 = vunpack.c.h.b16 %v406
    %v488 = vunpack.c.l.b16 %v407
    %v489 = vunpack.c.h.b16 %v407
    %v490 = vunpack.c.l.b16 %v408
    %v491 = vunpack.c.h.b16 %v408
    %v492 = vunpack.c.l.b16 %v409
    %v493 = vunpack.c.h.b16 %v409
    %v494 = vunpack.c.l.b16 %v410
    %v495 = vunpack.c.h.b16 %v410
    %v496 = vunpack.c.l.b16 %v411
    %v497 = vunpack.c.h.b16 %v411
    %v498 = vunpack.c.l.b16 %v412
    %v499 = vunpack.c.h.b16 %v412
    %v500 = vunpack.c.l.b16 %v413
    %v501 = vunpack.c.h.b16 %v413
    %v502 = vunpack.c.l.b16 %v414
    %v503 = vunpack.c.h.b16 %v414
    %v504 = vunpack.c.l.b16 %v415
    %v505 = vunpack.c.h.b16 %v415
    %v506 = vunpack.c.l.b16 %v416
    %v507 = vunpack.c.h.b16 %v416
    %v508 = vunpack.c.l.b16 %v417
    %v509 = vunpack.c.h.b16 %v417
    %v510 = vunpack.c.l.b16 %v418
    %v511 = vunpack.c.h.b16 %v418
    %v512 = vunpack.c.l.b16 %v419
    %v513 = vunpack.c.h.b16 %v419
    %v514 = vunpack.c.l.b16 %v420
    %v515 = vunpack.c.h.b16 %v420
    %v516 = vunpack.c.l.b16 %v421
    %v517 = vunpack.c.h.b16 %v421
    %v518 = vunpack.c.l.b16 %v422
    %v519 = vunpack.c.h.b16 %v422
    %v520 = vunpack.c.l.b16 %v423
    %v521 = vunpack.c.h.b16 %v423
    %v522 = vunpack.c.l.b16 %v424
    %v523 = vunpack.c.h.b16 %v424
    %v524 = vunpack.c.l.b16 %v425
    %v525 = vunpack.c.h.b16 %v425
    %v526 = vunpack.c.l.b16 %v426
    %v527 = vunpack.c.h.b16 %v426
    %v528 = vunpack.c.l.b16 %v427
    %v529 = vunpack.c.h.b16 %v427
    %v530 = vpack.c.b16 %v468, %v466
    %v531 = vpack.c.b16 %v469, %v467
    %v532 = vpack.c.b16 %v472, %v470
    %v533 = vpack.c.b16 %v473, %v471
    %v534 = vpack.c.b16 %v476, %v474
    %v535 = vpack.c.b16 %v477, %v475
    %v536 = vpack.c.b16 %v480, %v478
    %v537 = vpack.c.b16 %v481, %v479
    %v538 = vpack.c.b16 %v484, %v482
    %v539 = vpack.c.b16 %v485, %v483
    %v540 = vpack.c.b16 %v488, %v486
    %v541 = vpack.c.b16 %v489, %v487
    %v542 = vpack.c.b16 %v492, %v490
    %v543 = vpack.c.b16 %v493, %v491
    %v544 = vpack.c.b16 %v496, %v494
    %v545 = vpack.c.b16 %v497, %v495
    %v546 = vpack.c.b16 %v500, %v498
    %v547 = vpack.c.b16 %v501, %v499
    %v548 = vpack.c.b16 %v504, %v502
    %v549 = vpack.c.b16 %v505, %v503
    %v550 = vpack.c.b16 %v508, %v506
    %v551 = vpack.c.b16 %v509, %v507
    %v552 = vpack.c.b16 %v512, %v510
    %v553 = vpack.c.b16 %v513, %v511
    %v554 = vpack.c.b16 %v516, %v514
    %v555 = vpack.c.b16 %v517, %v515
    %v556 = vpack.c.b16 %v520, %v518
    %v557 = vpack.c.b16 %v521, %v519
    %v558 = vpack.c.b16 %v524, %v522
    %v559 = vpack.c.b16 %v525, %v523
    %v560 = vpack.c.b16 %v528, %v526
    %v561 = vpack.c.b16 %v529, %v527
    %594 = vmatpush.bf16.msra.mxu0 %v544
    %595 = vmatpush.bf16.msra.mxu0 %v542
    %596 = vmatpush.bf16.msra.mxu0 %v540
    %597 = vmatpush.bf16.msra.mxu0 %v538
    %598 = vmatpush.bf16.msra.mxu0 %v536
    %599 = vmatpush.bf16.msra.mxu0 %v534
    %600 = vmatpush.bf16.msra.mxu0 %v532
    %601 = vmatpush.bf16.msra.mxu0 %v530
    %602 = vmatmul.bf16.gmra.mxu0 %v394
    %v603 = vpop.f32.mrf.mxu0
    %v604 = vadd.f32 %v430, %v603
    %v605 = vpop.f32.mrf.mxu0
    %v606 = vadd.f32 %v430, %v605
    %607 = vdwg.mxu0
    %608 = vmatpush.bf16.msra.mxu0 %v560
    %609 = vmatpush.bf16.msra.mxu0 %v558
    %610 = vmatpush.bf16.msra.mxu0 %v556
    %611 = vmatpush.bf16.msra.mxu0 %v554
    %612 = vmatpush.bf16.msra.mxu0 %v552
    %613 = vmatpush.bf16.msra.mxu0 %v550
    %614 = vmatpush.bf16.msra.mxu0 %v548
    %615 = vmatpush.bf16.msra.mxu0 %v546
    %616 = vmatmul.bf16.gmra.mxu0 %v395
    %v617 = vpop.f32.mrf.mxu0
    %v618 = vadd.f32 %v604, %v617
    %v619 = vpop.f32.mrf.mxu0
    %v620 = vadd.f32 %v606, %v619
    %621 = vdwg.mxu0
    %622 = vmatpush.bf16.msra.mxu0 %v545
    %623 = vmatpush.bf16.msra.mxu0 %v543
    %624 = vmatpush.bf16.msra.mxu0 %v541
    %625 = vmatpush.bf16.msra.mxu0 %v539
    %626 = vmatpush.bf16.msra.mxu0 %v537
    %627 = vmatpush.bf16.msra.mxu0 %v535
    %628 = vmatpush.bf16.msra.mxu0 %v533
    %629 = vmatpush.bf16.msra.mxu0 %v531
    %630 = vmatmul.bf16.gmra.mxu0 %v394
    %v631 = vpop.f32.mrf.mxu0
    %v632 = vadd.f32 %v431, %v631
    %v633 = vpop.f32.mrf.mxu0
    %v634 = vadd.f32 %v431, %v633
    %635 = vdwg.mxu0
    %636 = vmatpush.bf16.msra.mxu0 %v561
    %637 = vmatpush.bf16.msra.mxu0 %v559
    %638 = vmatpush.bf16.msra.mxu0 %v557
    %639 = vmatpush.bf16.msra.mxu0 %v555
    %640 = vmatpush.bf16.msra.mxu0 %v553
    %641 = vmatpush.bf16.msra.mxu0 %v551
    %642 = vmatpush.bf16.msra.mxu0 %v549
    %643 = vmatpush.bf16.msra.mxu0 %v547
    %644 = vmatmul.bf16.gmra.mxu0 %v395
    %v645 = vpop.f32.mrf.mxu0
    %v646 = vadd.f32 %v632, %v645
    %v647 = vpop.f32.mrf.mxu0
    %v648 = vadd.f32 %v634, %v647
    %649 = vdwg.mxu0
    %v650 = vmax.f32 %v618, 0.0
    %v651 = vmax.f32 %v646, 0.0
    %v652 = vmax.f32 %v620, 0.0
    %v653 = vmax.f32 %v648, 0.0
    %v654 = vpack.c.bf16 %v652, %v650
    %v655 = vpack.c.bf16 %v653, %v651
    %v656 = vld [vmem:[#allocation7] sm:$0xf]
    %v657 = vld [vmem:[#allocation7 + $0x4] sm:$0xf]
    %v658 = vld [vmem:[#allocation7 + $0x8] sm:$0xf]
    %v659 = vld [vmem:[#allocation7 + $0xc] sm:$0xf]
    %v660 = vld [vmem:[#allocation7 + $0x10] sm:$0xf]
    %v661 = vld [vmem:[#allocation7 + $0x14] sm:$0xf]
    %v662 = vld [vmem:[#allocation7 + $0x18] sm:$0xf]
    %v663 = vld [vmem:[#allocation7 + $0x1c] sm:$0xf]
    %v664 = vld [vmem:[#allocation7 + $0x20] sm:$0xf]
    %v665 = vld [vmem:[#allocation7 + $0x24] sm:$0xf]
    %v666 = vld [vmem:[#allocation7 + $0x28] sm:$0xf]
    %v667 = vld [vmem:[#allocation7 + $0x2c] sm:$0xf]
    %v668 = vld [vmem:[#allocation7 + $0x30] sm:$0xf]
    %v669 = vld [vmem:[#allocation7 + $0x34] sm:$0xf]
    %v670 = vld [vmem:[#allocation7 + $0x38] sm:$0xf]
    %v671 = vld [vmem:[#allocation7 + $0x3c] sm:$0xf]
    %v672 = vld [vmem:[#allocation7 + $0x40] sm:$0xf]
    %v673 = vld [vmem:[#allocation7 + $0x44] sm:$0xf]
    %v674 = vld [vmem:[#allocation7 + $0x48] sm:$0xf]
    %v675 = vld [vmem:[#allocation7 + $0x4c] sm:$0xf]
    %v676 = vld [vmem:[#allocation7 + $0x50] sm:$0xf]
    %v677 = vld [vmem:[#allocation7 + $0x54] sm:$0xf]
    %v678 = vld [vmem:[#allocation7 + $0x58] sm:$0xf]
    %v679 = vld [vmem:[#allocation7 + $0x5c] sm:$0xf]
    %v680 = vld [vmem:[#allocation7 + $0x60] sm:$0xf]
    %v681 = vld [vmem:[#allocation7 + $0x64] sm:$0xf]
    %v682 = vld [vmem:[#allocation7 + $0x68] sm:$0xf]
    %v683 = vld [vmem:[#allocation7 + $0x6c] sm:$0xf]
    %v684 = vld [vmem:[#allocation7 + $0x70] sm:$0xf]
    %v685 = vld [vmem:[#allocation7 + $0x74] sm:$0xf]
    %v686 = vld [vmem:[#allocation7 + $0x78] sm:$0xf]
    %v687 = vld [vmem:[#allocation7 + $0x7c] sm:$0xf]
    %v688 = vld [vmem:[%s7] sm:$0x1]
    %v690 = vperm.slane %v688, 0
    %v724 = vunpack.c.l.b16 %v656
    %v725 = vunpack.c.l.b16 %v657
    %v726 = vunpack.c.l.b16 %v658
    %v727 = vunpack.c.l.b16 %v659
    %v728 = vunpack.c.l.b16 %v660
    %v729 = vunpack.c.l.b16 %v661
    %v730 = vunpack.c.l.b16 %v662
    %v731 = vunpack.c.l.b16 %v663
    %v732 = vunpack.c.l.b16 %v664
    %v733 = vunpack.c.l.b16 %v665
    %v734 = vunpack.c.l.b16 %v666
    %v735 = vunpack.c.l.b16 %v667
    %v736 = vunpack.c.l.b16 %v668
    %v737 = vunpack.c.l.b16 %v669
    %v738 = vunpack.c.l.b16 %v670
    %v739 = vunpack.c.l.b16 %v671
    %v740 = vunpack.c.l.b16 %v672
    %v741 = vunpack.c.l.b16 %v673
    %v742 = vunpack.c.l.b16 %v674
    %v743 = vunpack.c.l.b16 %v675
    %v744 = vunpack.c.l.b16 %v676
    %v745 = vunpack.c.l.b16 %v677
    %v746 = vunpack.c.l.b16 %v678
    %v747 = vunpack.c.l.b16 %v679
    %v748 = vunpack.c.l.b16 %v680
    %v749 = vunpack.c.l.b16 %v681
    %v750 = vunpack.c.l.b16 %v682
    %v751 = vunpack.c.l.b16 %v683
    %v752 = vunpack.c.l.b16 %v684
    %v753 = vunpack.c.l.b16 %v685
    %v754 = vunpack.c.l.b16 %v686
    %v755 = vunpack.c.l.b16 %v687
    %v756 = vpack.c.b16 %v725, %v724
    %v757 = vpack.c.b16 %v727, %v726
    %v758 = vpack.c.b16 %v729, %v728
    %v759 = vpack.c.b16 %v731, %v730
    %v760 = vpack.c.b16 %v733, %v732
    %v761 = vpack.c.b16 %v735, %v734
    %v762 = vpack.c.b16 %v737, %v736
    %v763 = vpack.c.b16 %v739, %v738
    %v764 = vpack.c.b16 %v741, %v740
    %v765 = vpack.c.b16 %v743, %v742
    %v766 = vpack.c.b16 %v745, %v744
    %v767 = vpack.c.b16 %v747, %v746
    %v768 = vpack.c.b16 %v749, %v748
    %v769 = vpack.c.b16 %v751, %v750
    %v770 = vpack.c.b16 %v753, %v752
    %v771 = vpack.c.b16 %v755, %v754
    %788 = vmatpush.bf16.msra.mxu0 %v763
    %789 = vmatpush.bf16.msra.mxu0 %v762
    %790 = vmatpush.bf16.msra.mxu0 %v761
    %791 = vmatpush.bf16.msra.mxu0 %v760
    %792 = vmatpush.bf16.msra.mxu0 %v759
    %793 = vmatpush.bf16.msra.mxu0 %v758
    %794 = vmatpush.bf16.msra.mxu0 %v757
    %795 = vmatpush.bf16.msra.mxu0 %v756
    %796 = vmatmul.bf16.gmra.mxu0 %v654
    %v797 = vpop.f32.mrf.mxu0
    %v798 = vadd.f32 %v690, %v797
    %v799 = vpop.f32.mrf.mxu0
    %v800 = vadd.f32 %v690, %v799
    %801 = vdwg.mxu0
    %802 = vmatpush.bf16.msra.mxu0 %v771
    %803 = vmatpush.bf16.msra.mxu0 %v770
    %804 = vmatpush.bf16.msra.mxu0 %v769
    %805 = vmatpush.bf16.msra.mxu0 %v768
    %806 = vmatpush.bf16.msra.mxu0 %v767
    %807 = vmatpush.bf16.msra.mxu0 %v766
    %808 = vmatpush.bf16.msra.mxu0 %v765
    %809 = vmatpush.bf16.msra.mxu0 %v764
    %810 = vmatmul.bf16.gmra.mxu0 %v655
    %v811 = vpop.f32.mrf.mxu0
    %v812 = vadd.f32 %v798, %v811
    %v813 = vpop.f32.mrf.mxu0
    %v814 = vadd.f32 %v800, %v813
    %815 = vdwg.mxu0
    %816 = vst [vmem:[#allocation8] sm:$0xff] %v812
    %817 = vst [vmem:[#allocation8 + $0x8] sm:$0xff] %v814
    // Predicated region
    $region46: #{tpu_custom_call.1} parent=1 // pred_check
      _
    $region47: #{tpu_custom_call.1} parent=1 // pred_check_branch
      %819 = sbr.rel (0) target = $region49
    $region48: #{tpu_custom_call.1} parent=1 // pred_region
      %821 = vsyncadd [#allocation4], 0
      %s822 = sshll.u32 [#allocation8], 4
      %s823 = int_to_ptr.vmem [resolvable:$true] %s822
      %s824 = sshll.u32 %s8, 4
      %s825 = int_to_ptr.hbm [resolvable:$true] %s824
      %830 = dma.vmem_to_hbm [thread:$0]  %s823, 256, %s825, [#allocation4], 128, 128, 8
    $region49: #{tpu_custom_call.1} parent=1 // pred_fallthru
      _
    // Predicated region
    $region50: #{tpu_custom_call.1} parent=1 // pred_check
      _
    $region51: #{tpu_custom_call.1} parent=1 // pred_check_branch
      %832 = sbr.rel (0) target = $region53
    $region52: #{tpu_custom_call.1} parent=1 // pred_region
      %834 = dma.done [#allocation4], 256
    $region53: #{tpu_custom_call.1} parent=1 // pred_fallthru
      _
    %835 = vsyncpa [#allocation3], 1
    %836 = vsyncpa [#allocation6], 1
    %837 = vsyncpa [#allocation4], 1

</llo_original>
